<compile_context>
chip_gen: v7x
topology: tpu7x:2x2x1
jax: 0.10.0
libtpu: 0.0.40
codegen_flags: <defaults>
</compile_context>

<pallas_src>
import functools

import jax
import jax.numpy as jnp
from jax.experimental import pallas as pl
from jax.experimental.pallas import tpu as pltpu

SUBLANE = 8


def _round_up(n, m):
    return ((n + m - 1) // m) * m


def _mlp_kernel(x_ref, w_ref, o_ref, *, in_features, out_features, r2, r3, rb):
    """One batch tile of the fused 3-layer MLP.

    x_ref : [TB, I]      input tile (f32)
    w_ref : [R, C]       packed bf16 slab: W1 | W2 | W3 | (b1,b2,b3 rows)
    o_ref : [TB, O]      exact-width output tile (f32)
    """
    cdt = w_ref.dtype                       # bf16 compute dtype for MXU inputs
    C = w_ref.shape[1]                      # slab width = max(H, O)

    x = x_ref[...].astype(cdt)
    w1 = w_ref[0:in_features, :]            # (I, C)
    w2 = w_ref[r2:r2 + C, :]                # (C, C)
    w3 = w_ref[r3:r3 + C, :]                # (C, C)
    bias = w_ref[rb:rb + SUBLANE, :].astype(jnp.float32)   # rows 0/1/2 = b1/b2/b3
    b1 = bias[0:1, :]
    b2 = bias[1:2, :]
    b3 = bias[2:3, :]

    h1 = jnp.dot(x, w1, preferred_element_type=jnp.float32)
    h1 = jnp.maximum(h1 + b1, 0.0)
    h2 = jnp.dot(h1.astype(cdt), w2, preferred_element_type=jnp.float32)
    h2 = jnp.maximum(h2 + b2, 0.0)
    h3 = jnp.dot(h2.astype(cdt), w3, preferred_element_type=jnp.float32)
    o_ref[...] = (h3 + b3)[:, :out_features].astype(o_ref.dtype)


def pack_params(params, dtype=jnp.bfloat16):
    """Pack W1/b1/W2/b2/W3/b3 into one contiguous, right-sized bf16 slab.

    Layout (rows):
      [0, I)            W1  (I x C)   columns [H:C] zero
      [ip, ip+C)        W2  (C x C)   rows/cols beyond H zero
      [ip+cp, ip+cp+C)  W3  (C x C)   rows beyond H zero, cols beyond O zero
      [rb, rb+8)        biases: row 0 = b1, row 1 = b2, row 2 = b3
    with C = max(H, O), ip = round_up(I, 8), cp = round_up(C, 8), rb = ip+2*cp.
    Zero padding is mathematically inert (padded hidden lanes stay exactly 0).
    Pack once; repeated forwards reuse the slab, so per-call HBM traffic is
    essentially x, the slab (~6 KiB bf16) and the exact-width output.
    """
    w1, b1 = params["w1"], params["b1"]
    w2, b2 = params["w2"], params["b2"]
    w3, b3 = params["w3"], params["b3"]
    I, H = w1.shape
    O = w3.shape[1]
    C = max(H, O)
    ip = _round_up(I, SUBLANE)
    cp = _round_up(C, SUBLANE)
    rb = ip + 2 * cp
    R = rb + SUBLANE

    slab = jnp.zeros((R, C), jnp.float32)
    slab = slab.at[0:I, 0:H].set(w1)
    slab = slab.at[ip:ip + H, 0:H].set(w2)
    slab = slab.at[ip + cp:ip + cp + H, 0:O].set(w3)
    slab = slab.at[rb + 0, 0:H].set(b1.reshape(-1))
    slab = slab.at[rb + 1, 0:H].set(b2.reshape(-1))
    slab = slab.at[rb + 2, 0:O].set(b3.reshape(-1))
    slab = slab.astype(dtype)

    return {"slab": slab, "I": I, "H": H, "O": O, "C": C,
            "r2": ip, "r3": ip + cp, "rb": rb}


def meta_value_network_forward(x, packed, *, block_b=1024):
    """Fused forward: relu(x@W1+b1) -> relu(.@W2+b2) -> .@W3+b3.

    x      : [B, input_size] float32
    packed : output of pack_params()
    returns: [B, output_size] float32
    """
    B, I = x.shape
    assert I == packed["I"]
    O = packed["O"]
    slab = packed["slab"]

    # Batch tile: as big as requested (amortizes per-grid-step overhead), but
    # split into >=2 tiles when B > 8 so the "parallel" axis feeds both
    # TensorCores on v7x (harmless extra step on single-TC v5e/v6e).
    TB = _round_up(min(block_b, B), SUBLANE)
    if B > SUBLANE:
        TB = min(TB, _round_up(-(-B // 2), SUBLANE))
    grid = (pl.cdiv(B, TB),)                # ragged last tile handled by Pallas

    kernel = functools.partial(
        _mlp_kernel, in_features=I, out_features=O,
        r2=packed["r2"], r3=packed["r3"], rb=packed["rb"])

    return pl.pallas_call(
        kernel,
        out_shape=jax.ShapeDtypeStruct((B, O), jnp.float32),
        grid=grid,
        in_specs=[
            pl.BlockSpec((TB, I), lambda i: (i, 0)),        # x: tiled over batch
            pl.BlockSpec(slab.shape, lambda i: (0, 0)),     # slab: VMEM-resident
        ],
        out_specs=pl.BlockSpec((TB, O), lambda i: (i, 0)),   # exact-width output
        compiler_params=pltpu.CompilerParams(
            dimension_semantics=("parallel",),               # megacore on v7x
        ),
    )(x, slab)


def init_params(key, input_size, hidden_size, output_size):
    """PyTorch nn.Linear-style init (uniform +-1/sqrt(fan_in)).

    Weights stored [in_features, out_features] so the kernel does x @ W + b
    (equivalent to PyTorch's x @ W.T with W [out, in]).
    """
    ks = jax.random.split(key, 6)

    def lin(kw, kb, fan_in, fan_out):
        bound = 1.0 / jnp.sqrt(jnp.float32(fan_in))
        w = jax.random.uniform(kw, (fan_in, fan_out), jnp.float32, -bound, bound)
        b = jax.random.uniform(kb, (1, fan_out), jnp.float32, -bound, bound)
        return w, b

    w1, b1 = lin(ks[0], ks[1], input_size, hidden_size)
    w2, b2 = lin(ks[2], ks[3], hidden_size, hidden_size)
    w3, b3 = lin(ks[4], ks[5], hidden_size, output_size)
    return {"w1": w1, "b1": b1, "w2": w2, "b2": b2, "w3": w3, "b3": b3}


def _reference(x, p):
    h1 = jnp.maximum(x @ p["w1"] + p["b1"], 0.0)
    h2 = jnp.maximum(h1 @ p["w2"] + p["b2"], 0.0)
    return h2 @ p["w3"] + p["b3"]


if __name__ == "__main__":
    # Shapes consistent with the module: batch=8, input=16, hidden=32, output=4
    batch, input_size, hidden_size, output_size = 8, 16, 32, 4

    key = jax.random.PRNGKey(0)
    k_x, k_p, k_x2 = jax.random.split(key, 3)
    x = jax.random.normal(k_x, (batch, input_size), jnp.float32)
    params = init_params(k_p, input_size, hidden_size, output_size)

    packed = pack_params(params)            # pack once (bf16 slab), reuse per call

    out = jax.block_until_ready(meta_value_network_forward(x, packed))
    ref = _reference(x, params)
    assert out.shape == (batch, output_size)
    # bf16 weights/activations on the MXU -> loosened tolerance vs f32 reference.
    assert jnp.allclose(out, ref, atol=5e-2, rtol=5e-2), "mismatch vs reference (B=8)"

    # Larger, non-tile-multiple batch: exercises the 2-tile parallel grid and
    # the ragged (masked) last output tile with no wrapper pad/slice passes.
    big_batch = 200
    x2 = jax.random.normal(k_x2, (big_batch, input_size), jnp.float32)
    out2 = jax.block_until_ready(meta_value_network_forward(x2, packed))
    ref2 = _reference(x2, params)
    assert out2.shape == (big_batch, output_size)
    assert jnp.allclose(out2, ref2, atol=5e-2, rtol=5e-2), "mismatch vs reference (B=200)"

    print("KERNEL_OK")
</pallas_src>

<mosaic_0001>
module attributes {stable_mosaic.version = 11 : i64} {
  func.func @_mlp_kernel(%arg0: i32, %arg1: memref<8x16xf32, #tpu.memory_space<vmem>>, %arg2: memref<88x32xbf16, #tpu.memory_space<vmem>>, %arg3: memref<8x4xf32, #tpu.memory_space<vmem>>) attributes {dimension_semantics = [#tpu.dimension_semantics<parallel>], iteration_bounds = array<i64: 1>, scalar_prefetch = 0 : i64, scratch_operands = 0 : i64, tpu.core_type = #tpu.core_type<tc>, window_params = [{transform_indices = @transform_0, window_bounds = array<i64: 8, 16>}, {pipeline_mode = #tpu.pipeline_mode<synchronous>, transform_indices = @transform_1, window_bounds = array<i64: 88, 32>}, {transform_indices = @transform_2, window_bounds = array<i64: 8, 4>}]} {
    %c0 = arith.constant 0 : index
    %c0_0 = arith.constant 0 : index
    %0 = vector.load %arg1[%c0, %c0_0] : memref<8x16xf32, #tpu.memory_space<vmem>>, vector<8x16xf32>
    %1 = arith.truncf %0 : vector<8x16xf32> to vector<8x16xbf16>
    %c0_1 = arith.constant 0 : index
    %c0_2 = arith.constant 0 : index
    %2 = vector.load %arg2[%c0_1, %c0_2] : memref<88x32xbf16, #tpu.memory_space<vmem>>, vector<16x32xbf16>
    %c16 = arith.constant 16 : index
    %c0_3 = arith.constant 0 : index
    %3 = vector.load %arg2[%c16, %c0_3] : memref<88x32xbf16, #tpu.memory_space<vmem>>, vector<32x32xbf16>
    %c48 = arith.constant 48 : index
    %c0_4 = arith.constant 0 : index
    %4 = vector.load %arg2[%c48, %c0_4] : memref<88x32xbf16, #tpu.memory_space<vmem>>, vector<32x32xbf16>
    %c80 = arith.constant 80 : index
    %c0_5 = arith.constant 0 : index
    %5 = vector.load %arg2[%c80, %c0_5] : memref<88x32xbf16, #tpu.memory_space<vmem>>, vector<8x32xbf16>
    %6 = arith.extf %5 : vector<8x32xbf16> to vector<8x32xf32>
    %7 = vector.extract_strided_slice %6 {offsets = [0, 0], sizes = [1, 32], strides = [1, 1]} : vector<8x32xf32> to vector<1x32xf32>
    %8 = vector.extract_strided_slice %6 {offsets = [1, 0], sizes = [1, 32], strides = [1, 1]} : vector<8x32xf32> to vector<1x32xf32>
    %9 = vector.extract_strided_slice %6 {offsets = [2, 0], sizes = [1, 32], strides = [1, 1]} : vector<8x32xf32> to vector<1x32xf32>
    %cst = arith.constant dense<0.000000e+00> : vector<8x32xf32>
    %10 = tpu.matmul %1, %2, %cst {dimension_numbers = #tpu.dot_dimension_numbers<[1], [0], [0], [1], [0, 0, 1, 1], [], []>} : vector<8x16xbf16>, vector<16x32xbf16>, vector<8x32xf32> -> vector<8x32xf32>
    %11 = vector.broadcast %7 : vector<1x32xf32> to vector<8x32xf32>
    %12 = arith.addf %10, %11 : vector<8x32xf32>
    %cst_6 = arith.constant 0.000000e+00 : f32
    %13 = vector.broadcast %cst_6 : f32 to vector<8x32xf32>
    %14 = arith.maximumf %12, %13 : vector<8x32xf32>
    %15 = arith.truncf %14 : vector<8x32xf32> to vector<8x32xbf16>
    %cst_7 = arith.constant dense<0.000000e+00> : vector<8x32xf32>
    %16 = tpu.matmul %15, %3, %cst_7 {dimension_numbers = #tpu.dot_dimension_numbers<[1], [0], [0], [1], [0, 0, 1, 1], [], []>} : vector<8x32xbf16>, vector<32x32xbf16>, vector<8x32xf32> -> vector<8x32xf32>
    %17 = vector.broadcast %8 : vector<1x32xf32> to vector<8x32xf32>
    %18 = arith.addf %16, %17 : vector<8x32xf32>
    %cst_8 = arith.constant 0.000000e+00 : f32
    %19 = vector.broadcast %cst_8 : f32 to vector<8x32xf32>
    %20 = arith.maximumf %18, %19 : vector<8x32xf32>
    %21 = arith.truncf %20 : vector<8x32xf32> to vector<8x32xbf16>
    %cst_9 = arith.constant dense<0.000000e+00> : vector<8x32xf32>
    %22 = tpu.matmul %21, %4, %cst_9 {dimension_numbers = #tpu.dot_dimension_numbers<[1], [0], [0], [1], [0, 0, 1, 1], [], []>} : vector<8x32xbf16>, vector<32x32xbf16>, vector<8x32xf32> -> vector<8x32xf32>
    %23 = vector.broadcast %9 : vector<1x32xf32> to vector<8x32xf32>
    %24 = arith.addf %22, %23 : vector<8x32xf32>
    %25 = vector.extract_strided_slice %24 {offsets = [0, 0], sizes = [8, 4], strides = [1, 1]} : vector<8x32xf32> to vector<8x4xf32>
    %c0_10 = arith.constant 0 : index
    %c0_11 = arith.constant 0 : index
    %26 = vector.load %arg3[%c0_10, %c0_11] : memref<8x4xf32, #tpu.memory_space<vmem>>, vector<8x4xf32>
    tpu.vector_store %arg3[%c0_10, %c0_11], %25 {strides = array<i32>} : memref<8x4xf32, #tpu.memory_space<vmem>>, vector<8x4xf32>,
    return
  }
  func.func @transform_0(%arg0: i32) -> (i32, i32) {
    %c0_i32 = arith.constant 0 : i32
    %c0_i32_0 = arith.constant 0 : i32
    return %arg0, %c0_i32 : i32, i32
  }
  func.func @transform_1(%arg0: i32) -> (i32, i32) {
    %c0_i32 = arith.constant 0 : i32
    %c0_i32_0 = arith.constant 0 : i32
    %c0_i32_1 = arith.constant 0 : i32
    return %c0_i32, %c0_i32_0 : i32, i32
  }
  func.func @transform_2(%arg0: i32) -> (i32, i32) {
    %c0_i32 = arith.constant 0 : i32
    %c0_i32_0 = arith.constant 0 : i32
    return %arg0, %c0_i32 : i32, i32
  }
}

</mosaic_0001>

<llo_original>
// kernel: tpu_custom_call.1
$region0: #{tpu_custom_call.1}
  #allocation0 [shape = 'u32[]', space=smem, size = 0x4, offset = 0x4, fixed_abs, tag = 'smem constant byte address 0x4 - core index']
  #allocation1 [shape = 'u32[144,128]{1,0:T(1,128)}', space=vmem, size = 0x12000, scoped, tag = 'internal scratch']
  %s0 = inlined_call_operand.vmem [shape: f32[8,16], index: 0, kind: input, shape index: {}]
  %s1 = inlined_call_operand.vmem [shape: bf16[88,32], index: 1, kind: input, shape index: {}]
  %s2 = inlined_call_operand.vmem [shape: f32[8,4], index: 2, kind: output, shape index: {}]
  %s3 = sld [smem:[#allocation0]]
  $region18: #{tpu_custom_call.1} parent=0
    _
  %s5 = ssub.s32 1, %s3
  %s6 = scalar_select 0, %s5, %s3
  // Predicated region
  $region2: #{tpu_custom_call.1} parent=0 // pred_check
    _
  $region3: #{tpu_custom_call.1} parent=0 // pred_check_branch
    %8 = sbr.rel (0) target = $region5
  $region4: #{tpu_custom_call.1} parent=0 // pred_region
    _
  $region5: #{tpu_custom_call.1} parent=0 // pred_fallthru
    _
  // Predicated region
  $region6: #{tpu_custom_call.1} parent=0 // pred_check
    _
  $region7: #{tpu_custom_call.1} parent=0 // pred_check_branch
    %10 = sbr.rel (0) target = $region9
  $region8: #{tpu_custom_call.1} parent=0 // pred_region
    _
  $region9: #{tpu_custom_call.1} parent=0 // pred_fallthru
    _
  %v12 = vld [vmem:[%s0] sm:$0xff]
  %v13 = vpack.c.bf16 %v12, %v12
  %v14 = vld [vmem:[%s1] sm:$0xf]
  %v15 = vld [vmem:[%s1 + $0x4] sm:$0xf]
  %v16 = vld [vmem:[%s1 + $0x8] sm:$0xf]
  %v17 = vld [vmem:[%s1 + $0xc] sm:$0xf]
  %v18 = vld [vmem:[%s1 + $0x10] sm:$0xf]
  %v19 = vld [vmem:[%s1 + $0x14] sm:$0xf]
  %v20 = vld [vmem:[%s1 + $0x18] sm:$0xf]
  %v21 = vld [vmem:[%s1 + $0x1c] sm:$0xf]
  %v22 = vld [vmem:[%s1 + $0x20] sm:$0xf]
  %v23 = vld [vmem:[%s1 + $0x24] sm:$0xf]
  %v24 = vld [vmem:[%s1 + $0x28] sm:$0xf]
  %v25 = vunpack.c.l.bf16 %v24
  %v26 = vlaneseq
  %v27 = vshrl.u32 %v26, 7
  %v28 = vsub.s32 0, %v27
  %v29 = vrot.slane %v25, %v28
  %v32 = vunpack.c.l.b16 %v14
  %v33 = vunpack.c.l.b16 %v15
  %v34 = vpack.c.b16 %v33, %v32
  %vm36 = vcmask 130048
  %v38 = vsel %vm36, %v13, 0
  %40 = vmatprep.subr.bf16.mxu0 0
  %41 = vmatpush1.bf16.msra.mxu0 %v34
  %42 = vmatprep.subr.bf16.mxu0 0
  %43 = vmatpush1.bf16.msra.mxu0 0
  %44 = vmatprep.subr.bf16.mxu0 0
  %45 = vmatpush1.bf16.msra.mxu0 0
  %46 = vmatprep.subr.bf16.mxu0 0
  %47 = vmatpush1.bf16.msra.mxu0 0
  %48 = vmatprep.subr.bf16.mxu0 0
  %49 = vmatpush1.bf16.msra.mxu0 0
  %50 = vmatprep.subr.bf16.mxu0 0
  %51 = vmatpush1.bf16.msra.mxu0 0
  %52 = vmatprep.subr.bf16.mxu0 0
  %53 = vmatpush1.bf16.msra.mxu0 0
  %54 = vmatprep.subr.bf16.mxu0 0
  %55 = vmatpush1.bf16.msra.mxu0 0
  %56 = vmatprep.subr.bf16.mxu0 0
  %57 = vmatpush1.bf16.msra.mxu0 0
  %58 = vmatprep.subr.bf16.mxu0 0
  %59 = vmatpush1.bf16.msra.mxu0 0
  %60 = vmatprep.subr.bf16.mxu0 0
  %61 = vmatpush1.bf16.msra.mxu0 0
  %62 = vmatprep.subr.bf16.mxu0 0
  %63 = vmatpush1.bf16.msra.mxu0 0
  %64 = vmatprep.subr.bf16.mxu0 0
  %65 = vmatpush1.bf16.msra.mxu0 0
  %66 = vmatprep.subr.bf16.mxu0 0
  %67 = vmatpush1.bf16.msra.mxu0 0
  %68 = vmatprep.subr.bf16.mxu0 0
  %69 = vmatpush1.bf16.msra.mxu0 0
  %70 = vmatprep.subr.bf16.mxu0 0
  %71 = vmatpush1.bf16.msra.mxu0 0
  %72 = vmatprep.mubr.bf16.mxu0 0
  %73 = vmatmul.mubr.bf16.gmra.mrb[0].mxu0 %v38
  %v74 = vpop.f32.mrb[0].mxu0
  %v75 = vadd.f32 %v29, %v74
  %v76 = vpop.f32.mrb[0].mxu0
  %v77 = vpop.f32.mrb[0].mxu0
  %v78 = vpop.f32.mrb[0].mxu0
  %79 = vdwg.mxu0
  %v80 = vmax.f32 %v75, 0.0
  %v81 = vpack.c.bf16 %v80, %v80
  %v82 = vlaneseq
  %v83 = vshrl.u32 %v82, 7
  %v84 = vsub.s32 1, %v83
  %v85 = vrot.slane %v25, %v84
  %v90 = vunpack.c.l.b16 %v16
  %v91 = vunpack.c.l.b16 %v17
  %v92 = vunpack.c.l.b16 %v18
  %v93 = vunpack.c.l.b16 %v19
  %v94 = vpack.c.b16 %v91, %v90
  %v95 = vpack.c.b16 %v93, %v92
  %vm98 = vcmask 261120
  %v100 = vsel %vm98, %v81, 0
  %102 = vmatprep.subr.bf16.mxu0 0
  %103 = vmatpush1.bf16.msra.mxu0 %v94
  %104 = vmatprep.subr.bf16.mxu0 0
  %105 = vmatpush1.bf16.msra.mxu0 %v95
  %106 = vmatprep.subr.bf16.mxu0 0
  %107 = vmatpush1.bf16.msra.mxu0 0
  %108 = vmatprep.subr.bf16.mxu0 0
  %109 = vmatpush1.bf16.msra.mxu0 0
  %110 = vmatprep.subr.bf16.mxu0 0
  %111 = vmatpush1.bf16.msra.mxu0 0
  %112 = vmatprep.subr.bf16.mxu0 0
  %113 = vmatpush1.bf16.msra.mxu0 0
  %114 = vmatprep.subr.bf16.mxu0 0
  %115 = vmatpush1.bf16.msra.mxu0 0
  %116 = vmatprep.subr.bf16.mxu0 0
  %117 = vmatpush1.bf16.msra.mxu0 0
  %118 = vmatprep.subr.bf16.mxu0 0
  %119 = vmatpush1.bf16.msra.mxu0 0
  %120 = vmatprep.subr.bf16.mxu0 0
  %121 = vmatpush1.bf16.msra.mxu0 0
  %122 = vmatprep.subr.bf16.mxu0 0
  %123 = vmatpush1.bf16.msra.mxu0 0
  %124 = vmatprep.subr.bf16.mxu0 0
  %125 = vmatpush1.bf16.msra.mxu0 0
  %126 = vmatprep.subr.bf16.mxu0 0
  %127 = vmatpush1.bf16.msra.mxu0 0
  %128 = vmatprep.subr.bf16.mxu0 0
  %129 = vmatpush1.bf16.msra.mxu0 0
  %130 = vmatprep.subr.bf16.mxu0 0
  %131 = vmatpush1.bf16.msra.mxu0 0
  %132 = vmatprep.subr.bf16.mxu0 0
  %133 = vmatpush1.bf16.msra.mxu0 0
  %134 = vmatprep.mubr.bf16.mxu0 0
  %135 = vmatmul.mubr.bf16.gmra.mrb[0].mxu0 %v100
  %v136 = vpop.f32.mrb[0].mxu0
  %v137 = vadd.f32 %v85, %v136
  %v138 = vpop.f32.mrb[0].mxu0
  %v139 = vpop.f32.mrb[0].mxu0
  %v140 = vpop.f32.mrb[0].mxu0
  %141 = vdwg.mxu0
  %v142 = vmax.f32 %v137, 0.0
  %v143 = vpack.c.bf16 %v142, %v142
  %v144 = vlaneseq
  %v145 = vshrl.u32 %v144, 7
  %v146 = vsub.s32 2, %v145
  %v147 = vrot.slane %v25, %v146
  %v152 = vunpack.c.l.b16 %v20
  %v153 = vunpack.c.l.b16 %v21
  %v154 = vunpack.c.l.b16 %v22
  %v155 = vunpack.c.l.b16 %v23
  %v156 = vpack.c.b16 %v153, %v152
  %v157 = vpack.c.b16 %v155, %v154
  %v161 = vsel %vm98, %v143, 0
  %163 = vmatprep.subr.bf16.mxu0 0
  %164 = vmatpush1.bf16.msra.mxu0 %v156
  %165 = vmatprep.subr.bf16.mxu0 0
  %166 = vmatpush1.bf16.msra.mxu0 %v157
  %167 = vmatprep.subr.bf16.mxu0 0
  %168 = vmatpush1.bf16.msra.mxu0 0
  %169 = vmatprep.subr.bf16.mxu0 0
  %170 = vmatpush1.bf16.msra.mxu0 0
  %171 = vmatprep.subr.bf16.mxu0 0
  %172 = vmatpush1.bf16.msra.mxu0 0
  %173 = vmatprep.subr.bf16.mxu0 0
  %174 = vmatpush1.bf16.msra.mxu0 0
  %175 = vmatprep.subr.bf16.mxu0 0
  %176 = vmatpush1.bf16.msra.mxu0 0
  %177 = vmatprep.subr.bf16.mxu0 0
  %178 = vmatpush1.bf16.msra.mxu0 0
  %179 = vmatprep.subr.bf16.mxu0 0
  %180 = vmatpush1.bf16.msra.mxu0 0
  %181 = vmatprep.subr.bf16.mxu0 0
  %182 = vmatpush1.bf16.msra.mxu0 0
  %183 = vmatprep.subr.bf16.mxu0 0
  %184 = vmatpush1.bf16.msra.mxu0 0
  %185 = vmatprep.subr.bf16.mxu0 0
  %186 = vmatpush1.bf16.msra.mxu0 0
  %187 = vmatprep.subr.bf16.mxu0 0
  %188 = vmatpush1.bf16.msra.mxu0 0
  %189 = vmatprep.subr.bf16.mxu0 0
  %190 = vmatpush1.bf16.msra.mxu0 0
  %191 = vmatprep.subr.bf16.mxu0 0
  %192 = vmatpush1.bf16.msra.mxu0 0
  %193 = vmatprep.subr.bf16.mxu0 0
  %194 = vmatpush1.bf16.msra.mxu0 0
  %195 = vmatprep.mubr.bf16.mxu0 0
  %196 = vmatmul.mubr.bf16.gmra.mrb[0].mxu0 %v161
  %v197 = vpop.f32.mrb[0].mxu0
  %v198 = vadd.f32 %v147, %v197
  %v199 = vpop.f32.mrb[0].mxu0
  %v200 = vpop.f32.mrb[0].mxu0
  %v201 = vpop.f32.mrb[0].mxu0
  %202 = vdwg.mxu0
  %vm203 = vcmask 31744
  %204 = vst.msk [vmem:[%s2] sm:$0xff] %vm203, %v198
  // Predicated region
  $region10: #{tpu_custom_call.1} parent=0 // pred_check
    _
  $region11: #{tpu_custom_call.1} parent=0 // pred_check_branch
    %206 = sbr.rel (0) target = $region13
  $region12: #{tpu_custom_call.1} parent=0 // pred_region
    _
  $region13: #{tpu_custom_call.1} parent=0 // pred_fallthru
    _
  // Predicated region
  $region14: #{tpu_custom_call.1} parent=0 // pred_check
    _
  $region15: #{tpu_custom_call.1} parent=0 // pred_check_branch
    %208 = sbr.rel (0) target = $region17
  $region16: #{tpu_custom_call.1} parent=0 // pred_region
    _
  $region17: #{tpu_custom_call.1} parent=0 // pred_fallthru
    _

</llo_original>
